<compile_context>
chip_gen: v7x
topology: tpu7x:2x2x1
jax: 0.10.0
libtpu: 0.0.40
codegen_flags: <defaults>
</compile_context>

<pallas_src>
import functools

import jax
import jax.numpy as jnp
from jax.experimental import pallas as pl
from jax.experimental.pallas import tpu as pltpu


def _round_up(x: int, m: int) -> int:
    return ((x + m - 1) // m) * m


def _decoder_kernel(x_ref, w1_ref, b1_ref, w2_ref, b2_ref, out_ref, *,
                    num_maps: int, translate_only: bool):
    # x_ref:  (B_tile, M*16)      w1_ref: (M*16, M*64)   b1_ref: (1, M*64)
    # w2_ref: (M*64, OUT_PAD)     b2_ref: (1, OUT_PAD)   out_ref: (B_tile, OUT_PAD)
    x = x_ref[...]
    h = jnp.dot(x, w1_ref[...], preferred_element_type=jnp.float32) + b1_ref[...]
    h = jnp.maximum(h, 0.0)                                     # ReLU
    out = jnp.dot(h, w2_ref[...], preferred_element_type=jnp.float32) + b2_ref[...]

    if translate_only:
        # Per-map flat 2x3 layout: [a00, a01, tx, a10, a11, ty].
        lane = jax.lax.broadcasted_iota(jnp.int32, out.shape, 1)
        col = lane % 6
        valid = lane < num_maps * 6
        out = jnp.where(valid & ((col == 0) | (col == 4)), jnp.float32(1.0), out)
        out = jnp.where(valid & ((col == 1) | (col == 3)), jnp.float32(0.0), out)

    out_ref[...] = out.astype(out_ref.dtype)


def transform_decoder_forward(inputs, params, *, num_maps: int,
                              translate_only: bool):
    """Pallas equivalent of TransformDecoder.forward.

    inputs: any shape whose content reshapes to (-1, num_maps, 16)
    params: dict with w1 (M,16,64), b1 (M,1,64), w2 (M,64,6), b2 (M,1,6)
            (w1/w2 already transposed vs. torch's (out, in) convention)
    returns: (B, num_maps, 2, 3) float32
    """
    M = num_maps
    K = M * 16            # fused input width
    H = M * 64            # fused hidden width
    OUT = M * 6           # fused output width
    OUT_PAD = _round_up(OUT, 128)   # lane-dense output slab

    x = jnp.reshape(inputs, (-1, K)).astype(jnp.float32)   # natural (B, M*16) layout
    B = x.shape[0]

    w1, b1, w2, b2 = params["w1"], params["b1"], params["w2"], params["b2"]

    # Build block-diagonal weights (a few KB; plain-JAX prep, done once per call).
    eye = jnp.eye(M, dtype=jnp.float32)
    w1_bd = jnp.einsum("mio,mn->mino", w1, eye).reshape(K, H)
    w2_bd = jnp.einsum("mho,mn->mhno", w2, eye).reshape(H, OUT)
    w2_bd = jnp.pad(w2_bd, ((0, 0), (0, OUT_PAD - OUT)))
    b1_flat = jnp.reshape(b1, (1, H))
    b2_flat = jnp.pad(jnp.reshape(b2, (1, OUT)), ((0, 0), (0, OUT_PAD - OUT)))

    # B tiling: multiple of 8 sublanes, up to 256 rows to fill the MXU M dim;
    # the grid axis over B tiles is "parallel" (keeps both v7x TCs busy).
    b_tile = min(256, _round_up(B, 8))
    B_pad = _round_up(B, b_tile)
    if B_pad != B:
        x = jnp.pad(x, ((0, B_pad - B), (0, 0)))
    grid = (B_pad // b_tile,)

    kernel = functools.partial(_decoder_kernel, num_maps=M,
                               translate_only=translate_only)

    out_slab = pl.pallas_call(
        kernel,
        out_shape=jax.ShapeDtypeStruct((B_pad, OUT_PAD), jnp.float32),
        grid_spec=pltpu.PrefetchScalarGridSpec(
            num_scalar_prefetch=0,
            grid=grid,
            in_specs=[
                pl.BlockSpec((b_tile, K), lambda i: (i, 0)),     # x tile
                pl.BlockSpec((K, H), lambda i: (0, 0)),          # W1 block-diag
                pl.BlockSpec((1, H), lambda i: (0, 0)),          # b1
                pl.BlockSpec((H, OUT_PAD), lambda i: (0, 0)),    # W2 block-diag (padded)
                pl.BlockSpec((1, OUT_PAD), lambda i: (0, 0)),    # b2 (padded)
            ],
            out_specs=pl.BlockSpec((b_tile, OUT_PAD), lambda i: (i, 0)),
        ),
        compiler_params=pltpu.CompilerParams(
            dimension_semantics=("parallel",)),
    )(x, w1_bd, b1_flat, w2_bd, b2_flat)                         # (B_pad, OUT_PAD)

    # Free (no-transpose) view back to the PyTorch output layout.
    out = out_slab[:B, :OUT]
    return jnp.reshape(out, (B, M, 2, 3))


def init_params(key, num_maps: int):
    """Deterministic synthetic parameters (shapes from the module __init__)."""
    k1, k2, k3, k4 = jax.random.split(key, 4)
    w1 = jax.random.normal(k1, (num_maps, 16, 64), jnp.float32) * 0.1
    b1 = jax.random.normal(k2, (num_maps, 1, 64), jnp.float32) * 0.1
    w2 = jax.random.normal(k3, (num_maps, 64, 6), jnp.float32) * 0.1
    b2 = jax.random.normal(k4, (num_maps, 1, 6), jnp.float32) * 0.1
    return {"w1": w1, "b1": b1, "w2": w2, "b2": b2}


def _reference(inputs, params, num_maps, translate_only):
    x = jnp.reshape(inputs, (-1, num_maps, 16)).astype(jnp.float32)
    x_m = jnp.transpose(x, (1, 0, 2))                        # (M,B,16)
    h = jnp.einsum("mbi,mio->mbo", x_m, params["w1"]) + params["b1"]
    h = jnp.maximum(h, 0.0)
    o = jnp.einsum("mbh,mho->mbo", h, params["w2"]) + params["b2"]
    o = jnp.transpose(o, (1, 0, 2)).reshape(-1, num_maps, 2, 3)
    if translate_only:
        o = o.at[:, :, 0, 0].set(1.0)
        o = o.at[:, :, 0, 1].set(0.0)
        o = o.at[:, :, 1, 0].set(0.0)
        o = o.at[:, :, 1, 1].set(1.0)
    return o


if __name__ == "__main__":
    num_maps = 4
    B = 8

    key = jax.random.PRNGKey(0)
    k_in, k_par = jax.random.split(key)
    # Input as the module would receive it (anything .view-able to (-1, M, 16)).
    x = jax.random.normal(k_in, (B, num_maps * 16), jnp.float32)
    params = init_params(k_par, num_maps)

    # Primary run: translate_only=True (matches module default usage).
    out = transform_decoder_forward(
        x, params, num_maps=num_maps, translate_only=True)
    out = jax.block_until_ready(out)
    ref = _reference(x, params, num_maps, True)
    assert out.shape == (B, num_maps, 2, 3)
    assert jnp.allclose(out, ref, atol=1e-5, rtol=1e-5)

    # Also verify the unmasked (translate_only=False) path.
    out_f = jax.block_until_ready(transform_decoder_forward(
        x, params, num_maps=num_maps, translate_only=False))
    ref_f = _reference(x, params, num_maps, False)
    assert jnp.allclose(out_f, ref_f, atol=1e-5, rtol=1e-5)

    print("KERNEL_OK")
</pallas_src>

<mosaic_0001>
module attributes {stable_mosaic.version = 11 : i64} {
  func.func @_decoder_kernel(%arg0: i32, %arg1: memref<8x64xf32, #tpu.memory_space<vmem>>, %arg2: memref<64x256xf32, #tpu.memory_space<vmem>>, %arg3: memref<1x256xf32, #tpu.memory_space<vmem>>, %arg4: memref<256x128xf32, #tpu.memory_space<vmem>>, %arg5: memref<1x128xf32, #tpu.memory_space<vmem>>, %arg6: memref<8x128xf32, #tpu.memory_space<vmem>>) attributes {dimension_semantics = [#tpu.dimension_semantics<parallel>], iteration_bounds = array<i64: 1>, scalar_prefetch = 0 : i64, scratch_operands = 0 : i64, tpu.core_type = #tpu.core_type<tc>, window_params = [{transform_indices = @transform_0, window_bounds = array<i64: 8, 64>}, {pipeline_mode = #tpu.pipeline_mode<synchronous>, transform_indices = @transform_1, window_bounds = array<i64: 64, 256>}, {pipeline_mode = #tpu.pipeline_mode<synchronous>, transform_indices = @transform_2, window_bounds = array<i64: 1, 256>}, {pipeline_mode = #tpu.pipeline_mode<synchronous>, transform_indices = @transform_3, window_bounds = array<i64: 256, 128>}, {pipeline_mode = #tpu.pipeline_mode<synchronous>, transform_indices = @transform_4, window_bounds = array<i64: 1, 128>}, {transform_indices = @transform_5, window_bounds = array<i64: 8, 128>}]} {
    %c0 = arith.constant 0 : index
    %c0_0 = arith.constant 0 : index
    %0 = vector.load %arg1[%c0, %c0_0] : memref<8x64xf32, #tpu.memory_space<vmem>>, vector<8x64xf32>
    %c0_1 = arith.constant 0 : index
    %c0_2 = arith.constant 0 : index
    %1 = vector.load %arg2[%c0_1, %c0_2] : memref<64x256xf32, #tpu.memory_space<vmem>>, vector<64x256xf32>
    %cst = arith.constant dense<0.000000e+00> : vector<8x256xf32>
    %2 = tpu.matmul %0, %1, %cst {dimension_numbers = #tpu.dot_dimension_numbers<[1], [0], [0], [1], [0, 0, 1, 1], [], []>} : vector<8x64xf32>, vector<64x256xf32>, vector<8x256xf32> -> vector<8x256xf32>
    %c0_3 = arith.constant 0 : index
    %c0_4 = arith.constant 0 : index
    %3 = vector.load %arg3[%c0_3, %c0_4] : memref<1x256xf32, #tpu.memory_space<vmem>>, vector<1x256xf32>
    %4 = vector.broadcast %3 : vector<1x256xf32> to vector<8x256xf32>
    %5 = arith.addf %2, %4 : vector<8x256xf32>
    %cst_5 = arith.constant 0.000000e+00 : f32
    %6 = vector.broadcast %cst_5 : f32 to vector<8x256xf32>
    %7 = arith.maximumf %5, %6 : vector<8x256xf32>
    %c0_6 = arith.constant 0 : index
    %c0_7 = arith.constant 0 : index
    %8 = vector.load %arg4[%c0_6, %c0_7] : memref<256x128xf32, #tpu.memory_space<vmem>>, vector<256x128xf32>
    %cst_8 = arith.constant dense<0.000000e+00> : vector<8x128xf32>
    %9 = tpu.matmul %7, %8, %cst_8 {dimension_numbers = #tpu.dot_dimension_numbers<[1], [0], [0], [1], [0, 0, 1, 1], [], []>} : vector<8x256xf32>, vector<256x128xf32>, vector<8x128xf32> -> vector<8x128xf32>
    %c0_9 = arith.constant 0 : index
    %c0_10 = arith.constant 0 : index
    %10 = vector.load %arg5[%c0_9, %c0_10] : memref<1x128xf32, #tpu.memory_space<vmem>>, vector<1x128xf32>
    %11 = vector.broadcast %10 : vector<1x128xf32> to vector<8x128xf32>
    %12 = arith.addf %9, %11 : vector<8x128xf32>
    %13 = tpu.iota {dimensions = array<i32: 1>} : vector<8x128xi32>
    %c6_i32 = arith.constant 6 : i32
    %c0_i32 = arith.constant 0 : i32
    %14 = arith.cmpi eq, %c6_i32, %c0_i32 : i32
    %c1_i32 = arith.constant 1 : i32
    %15 = arith.select %14, %c1_i32, %c6_i32 : i32
    %16 = vector.broadcast %15 : i32 to vector<8x128xi32>
    %17 = arith.remsi %13, %16 : vector<8x128xi32>
    %c0_i32_11 = arith.constant 0 : i32
    %18 = vector.broadcast %c0_i32_11 : i32 to vector<8x128xi32>
    %19 = arith.cmpi ne, %17, %18 : vector<8x128xi32>
    %c0_i32_12 = arith.constant 0 : i32
    %20 = vector.broadcast %c0_i32_12 : i32 to vector<8x128xi32>
    %21 = arith.cmpi slt, %17, %20 : vector<8x128xi32>
    %c0_i32_13 = arith.constant 0 : i32
    %22 = arith.cmpi slt, %15, %c0_i32_13 : i32
    %23 = vector.broadcast %22 : i1 to vector<8x128xi1>
    %24 = vector.broadcast %23 : vector<8x128xi1> to vector<8x128xi1>
    %25 = arith.xori %21, %24 : vector<8x128xi1>
    %26 = arith.andi %25, %19 : vector<8x128xi1>
    %27 = vector.broadcast %15 : i32 to vector<8x128xi32>
    %28 = arith.addi %17, %27 : vector<8x128xi32>
    %29 = arith.select %26, %28, %17 : vector<8x128xi1>, vector<8x128xi32>
    %c24_i32 = arith.constant 24 : i32
    %30 = vector.broadcast %c24_i32 : i32 to vector<8x128xi32>
    %31 = arith.cmpi slt, %13, %30 : vector<8x128xi32>
    %c0_i32_14 = arith.constant 0 : i32
    %32 = vector.broadcast %c0_i32_14 : i32 to vector<8x128xi32>
    %33 = arith.cmpi eq, %29, %32 : vector<8x128xi32>
    %c4_i32 = arith.constant 4 : i32
    %34 = vector.broadcast %c4_i32 : i32 to vector<8x128xi32>
    %35 = arith.cmpi eq, %29, %34 : vector<8x128xi32>
    %36 = arith.ori %33, %35 : vector<8x128xi1>
    %37 = arith.andi %31, %36 : vector<8x128xi1>
    %cst_15 = arith.constant 1.000000e+00 : f32
    %38 = vector.broadcast %cst_15 : f32 to vector<8x128xf32>
    %39 = arith.select %37, %38, %12 : vector<8x128xi1>, vector<8x128xf32>
    %c1_i32_16 = arith.constant 1 : i32
    %40 = vector.broadcast %c1_i32_16 : i32 to vector<8x128xi32>
    %41 = arith.cmpi eq, %29, %40 : vector<8x128xi32>
    %c3_i32 = arith.constant 3 : i32
    %42 = vector.broadcast %c3_i32 : i32 to vector<8x128xi32>
    %43 = arith.cmpi eq, %29, %42 : vector<8x128xi32>
    %44 = arith.ori %41, %43 : vector<8x128xi1>
    %45 = arith.andi %31, %44 : vector<8x128xi1>
    %cst_17 = arith.constant 0.000000e+00 : f32
    %46 = vector.broadcast %cst_17 : f32 to vector<8x128xf32>
    %47 = arith.select %45, %46, %39 : vector<8x128xi1>, vector<8x128xf32>
    %c0_18 = arith.constant 0 : index
    %c0_19 = arith.constant 0 : index
    %48 = vector.load %arg6[%c0_18, %c0_19] : memref<8x128xf32, #tpu.memory_space<vmem>>, vector<8x128xf32>
    tpu.vector_store %arg6[%c0_18, %c0_19], %47 {strides = array<i32>} : memref<8x128xf32, #tpu.memory_space<vmem>>, vector<8x128xf32>,
    return
  }
  func.func @transform_0(%arg0: i32) -> (i32, i32) {
    %c0_i32 = arith.constant 0 : i32
    %c0_i32_0 = arith.constant 0 : i32
    return %arg0, %c0_i32 : i32, i32
  }
  func.func @transform_1(%arg0: i32) -> (i32, i32) {
    %c0_i32 = arith.constant 0 : i32
    %c0_i32_0 = arith.constant 0 : i32
    %c0_i32_1 = arith.constant 0 : i32
    return %c0_i32, %c0_i32_0 : i32, i32
  }
  func.func @transform_2(%arg0: i32) -> (i32, i32) {
    %c0_i32 = arith.constant 0 : i32
    %c0_i32_0 = arith.constant 0 : i32
    %c0_i32_1 = arith.constant 0 : i32
    return %c0_i32, %c0_i32_0 : i32, i32
  }
  func.func @transform_3(%arg0: i32) -> (i32, i32) {
    %c0_i32 = arith.constant 0 : i32
    %c0_i32_0 = arith.constant 0 : i32
    %c0_i32_1 = arith.constant 0 : i32
    return %c0_i32, %c0_i32_0 : i32, i32
  }
  func.func @transform_4(%arg0: i32) -> (i32, i32) {
    %c0_i32 = arith.constant 0 : i32
    %c0_i32_0 = arith.constant 0 : i32
    %c0_i32_1 = arith.constant 0 : i32
    return %c0_i32, %c0_i32_0 : i32, i32
  }
  func.func @transform_5(%arg0: i32) -> (i32, i32) {
    %c0_i32 = arith.constant 0 : i32
    %c0_i32_0 = arith.constant 0 : i32
    return %arg0, %c0_i32 : i32, i32
  }
}

</mosaic_0001>

<llo_original>
// kernel: tpu_custom_call.1
$region0: #{tpu_custom_call.1}
  #allocation0 [shape = 'u32[]', space=smem, size = 0x4, offset = 0x4, fixed_abs, tag = 'smem constant byte address 0x4 - core index']
  #allocation1 [shape = 'u32[144,128]{1,0:T(1,128)}', space=vmem, size = 0x12000, scoped, tag = 'internal scratch']
  %s0 = inlined_call_operand.hbm [shape: f32[8,64], index: 0, kind: input, shape index: {}]
  %s1 = inlined_call_operand.hbm [shape: f32[64,256], index: 1, kind: input, shape index: {}]
  %s2 = inlined_call_operand.vmem [shape: f32[1,256], index: 2, kind: input, shape index: {}]
  %s3 = inlined_call_operand.hbm [shape: f32[256,128], index: 3, kind: input, shape index: {}]
  %s4 = inlined_call_operand.vmem [shape: f32[1,128], index: 4, kind: input, shape index: {}]
  %s5 = inlined_call_operand.hbm [shape: f32[8,128], index: 5, kind: output, shape index: {}]
  %s6 = sld [smem:[#allocation0]]
  $region42: #{tpu_custom_call.1} parent=0
    _
  %s8 = ssub.s32 1, %s6
  %s9 = scalar_select 0, %s8, %s6
  $region1: #{tpu_custom_call.1} parent=0
    #allocation2 [shape = 'u8[4096]{0}', space=vmem, size = 0x1000, scoped, tag = 'input window, operand 0, single buffered']
    #allocation3 [shape = 's32[1]{0}', space=sflag, size = 0x4, scoped, tag = 'scoped memory for tpu_custom_call.1']
    #allocation4 [shape = 's32[1]{0}', space=sflag, size = 0x4, scoped, tag = 'scoped memory for tpu_custom_call.1']
    #allocation5 [shape = 'u8[65536]{0}', space=vmem, size = 0x10000, scoped, tag = 'input window, operand 1, single buffered']
    #allocation6 [shape = 's32[1]{0}', space=sflag, size = 0x4, scoped, tag = 'scoped memory for tpu_custom_call.1']
    #allocation7 [shape = 'u8[131072]{0}', space=vmem, size = 0x20000, scoped, tag = 'input window, operand 3, single buffered']
    #allocation8 [shape = 'u8[4096]{0}', space=vmem, size = 0x1000, scoped, tag = 'output window, operand 0, single buffered']
    %10 = vsyncpa [#allocation3], 0
    %11 = vsyncpa [#allocation6], 0
    %12 = vsyncpa [#allocation4], 0
    // Predicated region
    $region2: #{tpu_custom_call.1} parent=1 // pred_check
      _
    $region3: #{tpu_custom_call.1} parent=1 // pred_check_branch
      %14 = sbr.rel (0) target = $region5
    $region4: #{tpu_custom_call.1} parent=1 // pred_region
      %s16 = ssub.s32 128, 128
      %17 = vsyncadd [#allocation3], %s16
      %s19 = sshll.u32 [#allocation2], 4
      %s20 = int_to_ptr.vmem [resolvable:$true] %s19
      %22 = dma.hbm_to_vmem [thread:$0]  %s0, 128, %s20, [#allocation3]
    $region5: #{tpu_custom_call.1} parent=1 // pred_fallthru
      _
    // Predicated region
    $region6: #{tpu_custom_call.1} parent=1 // pred_check
      _
    $region7: #{tpu_custom_call.1} parent=1 // pred_check_branch
      %24 = sbr.rel (0) target = $region9
    $region8: #{tpu_custom_call.1} parent=1 // pred_region
      %s26 = ssub.s32 2048, 2048
      %27 = vsyncadd [#allocation6], %s26
      %s28 = sshll.u32 [#allocation5], 4
      %s29 = int_to_ptr.vmem [resolvable:$true] %s28
      %34 = dma.hbm_to_vmem [thread:$0]  %s1, 2048, %s29, [#allocation6], 256, 256, 16
    $region9: #{tpu_custom_call.1} parent=1 // pred_fallthru
      _
    // Predicated region
    $region10: #{tpu_custom_call.1} parent=1 // pred_check
      _
    $region11: #{tpu_custom_call.1} parent=1 // pred_check_branch
      %36 = sbr.rel (0) target = $region13
    $region12: #{tpu_custom_call.1} parent=1 // pred_region
      _
    $region13: #{tpu_custom_call.1} parent=1 // pred_fallthru
      _
    // Predicated region
    $region14: #{tpu_custom_call.1} parent=1 // pred_check
      _
    $region15: #{tpu_custom_call.1} parent=1 // pred_check_branch
      %38 = sbr.rel (0) target = $region17
    $region16: #{tpu_custom_call.1} parent=1 // pred_region
      %s40 = ssub.s32 4096, 4096
      %41 = vsyncadd [#allocation6], %s40
      %s42 = sshll.u32 [#allocation7], 4
      %s43 = int_to_ptr.vmem [resolvable:$true] %s42
      %48 = dma.hbm_to_vmem [thread:$0]  %s3, 4096, %s43, [#allocation6], 128, 128, 8
    $region17: #{tpu_custom_call.1} parent=1 // pred_fallthru
      _
    // Predicated region
    $region18: #{tpu_custom_call.1} parent=1 // pred_check
      _
    $region19: #{tpu_custom_call.1} parent=1 // pred_check_branch
      %50 = sbr.rel (0) target = $region21
    $region20: #{tpu_custom_call.1} parent=1 // pred_region
      _
    $region21: #{tpu_custom_call.1} parent=1 // pred_fallthru
      _
    // Predicated region
    $region22: #{tpu_custom_call.1} parent=1 // pred_check
      _
    $region23: #{tpu_custom_call.1} parent=1 // pred_check_branch
      %52 = sbr.rel (0) target = $region25
    $region24: #{tpu_custom_call.1} parent=1 // pred_region
      %53 = dma.done [#allocation3], 128
    $region25: #{tpu_custom_call.1} parent=1 // pred_fallthru
      _
    // Predicated region
    $region26: #{tpu_custom_call.1} parent=1 // pred_check
      _
    $region27: #{tpu_custom_call.1} parent=1 // pred_check_branch
      %55 = sbr.rel (0) target = $region29
    $region28: #{tpu_custom_call.1} parent=1 // pred_region
      %56 = dma.done [#allocation6], 2048
    $region29: #{tpu_custom_call.1} parent=1 // pred_fallthru
      _
    // Predicated region
    $region30: #{tpu_custom_call.1} parent=1 // pred_check
      _
    $region31: #{tpu_custom_call.1} parent=1 // pred_check_branch
      %58 = sbr.rel (0) target = $region33
    $region32: #{tpu_custom_call.1} parent=1 // pred_region
      %59 = dma.done [#allocation6], 4096
    $region33: #{tpu_custom_call.1} parent=1 // pred_fallthru
      _
    %v60 = vld [vmem:[#allocation2] sm:$0xff]
    %v61 = vld [vmem:[#allocation5] sm:$0xff]
    %v62 = vld [vmem:[#allocation5 + $0x8] sm:$0xff]
    %v63 = vld [vmem:[#allocation5 + $0x10] sm:$0xff]
    %v64 = vld [vmem:[#allocation5 + $0x18] sm:$0xff]
    %v65 = vld [vmem:[#allocation5 + $0x20] sm:$0xff]
    %v66 = vld [vmem:[#allocation5 + $0x28] sm:$0xff]
    %v67 = vld [vmem:[#allocation5 + $0x30] sm:$0xff]
    %v68 = vld [vmem:[#allocation5 + $0x38] sm:$0xff]
    %v69 = vld [vmem:[#allocation5 + $0x40] sm:$0xff]
    %v70 = vld [vmem:[#allocation5 + $0x48] sm:$0xff]
    %v71 = vld [vmem:[#allocation5 + $0x50] sm:$0xff]
    %v72 = vld [vmem:[#allocation5 + $0x58] sm:$0xff]
    %v73 = vld [vmem:[#allocation5 + $0x60] sm:$0xff]
    %v74 = vld [vmem:[#allocation5 + $0x68] sm:$0xff]
    %v75 = vld [vmem:[#allocation5 + $0x70] sm:$0xff]
    %v76 = vld [vmem:[#allocation5 + $0x78] sm:$0xff]
    %v77 = vld [vmem:[%s2] sm:$0x3]
    %v79 = vlaneseq
    %v80 = vshrl.u32 %v79, 7
    %v81 = vsub.s32 0, %v80
    %v82 = vrot.slane %v77, %v81
    %v83 = vlaneseq
    %v84 = vshrl.u32 %v83, 7
    %v85 = vsub.s32 1, %v84
    %v86 = vrot.slane %v77, %v85
    %vm89 = vcmask 523264
    %v91 = vsel %vm89, %v60, 0
    %93 = vmatprep.subr.mxu0 %v62
    %94 = vmatpush1.msra.mxu0 %v61
    %95 = vmatprep.subr.mxu0 %v64
    %96 = vmatpush1.msra.mxu0 %v63
    %97 = vmatprep.subr.mxu0 %v66
    %98 = vmatpush1.msra.mxu0 %v65
    %99 = vmatprep.subr.mxu0 %v68
    %100 = vmatpush1.msra.mxu0 %v67
    %101 = vmatprep.subr.mxu0 %v70
    %102 = vmatpush1.msra.mxu0 %v69
    %103 = vmatprep.subr.mxu0 %v72
    %104 = vmatpush1.msra.mxu0 %v71
    %105 = vmatprep.subr.mxu0 %v74
    %106 = vmatpush1.msra.mxu0 %v73
    %107 = vmatprep.subr.mxu0 %v76
    %108 = vmatpush1.msra.mxu0 %v75
    %109 = vmatprep.subr.mxu0 0.0
    %110 = vmatpush1.msra.mxu0 0.0
    %111 = vmatprep.subr.mxu0 0.0
    %112 = vmatpush1.msra.mxu0 0.0
    %113 = vmatprep.subr.mxu0 0.0
    %114 = vmatpush1.msra.mxu0 0.0
    %115 = vmatprep.subr.mxu0 0.0
    %116 = vmatpush1.msra.mxu0 0.0
    %117 = vmatprep.subr.mxu0 0.0
    %118 = vmatpush1.msra.mxu0 0.0
    %119 = vmatprep.subr.mxu0 0.0
    %120 = vmatpush1.msra.mxu0 0.0
    %121 = vmatprep.subr.mxu0 0.0
    %122 = vmatpush1.msra.mxu0 0.0
    %123 = vmatprep.subr.mxu0 0.0
    %124 = vmatpush1.msra.mxu0 0.0
    %125 = vmatprep.subr.mxu0 0.0
    %126 = vmatpush1.msra.mxu0 0.0
    %127 = vmatprep.subr.mxu0 0.0
    %128 = vmatpush1.msra.mxu0 0.0
    %129 = vmatprep.subr.mxu0 0.0
    %130 = vmatpush1.msra.mxu0 0.0
    %131 = vmatprep.subr.mxu0 0.0
    %132 = vmatpush1.msra.mxu0 0.0
    %133 = vmatprep.subr.mxu0 0.0
    %134 = vmatpush1.msra.mxu0 0.0
    %135 = vmatprep.subr.mxu0 0.0
    %136 = vmatpush1.msra.mxu0 0.0
    %137 = vmatprep.subr.mxu0 0.0
    %138 = vmatpush1.msra.mxu0 0.0
    %139 = vmatprep.subr.mxu0 0.0
    %140 = vmatpush1.msra.mxu0 0.0
    %141 = vmatprep.subr.mxu0 0.0
    %142 = vmatpush1.msra.mxu0 0.0
    %143 = vmatprep.subr.mxu0 0.0
    %144 = vmatpush1.msra.mxu0 0.0
    %145 = vmatprep.subr.mxu0 0.0
    %146 = vmatpush1.msra.mxu0 0.0
    %147 = vmatprep.subr.mxu0 0.0
    %148 = vmatpush1.msra.mxu0 0.0
    %149 = vmatprep.subr.mxu0 0.0
    %150 = vmatpush1.msra.mxu0 0.0
    %151 = vmatprep.subr.mxu0 0.0
    %152 = vmatpush1.msra.mxu0 0.0
    %153 = vmatprep.subr.mxu0 0.0
    %154 = vmatpush1.msra.mxu0 0.0
    %155 = vmatprep.subr.mxu0 0.0
    %156 = vmatpush1.msra.mxu0 0.0
    %157 = vmatprep.mubr.f32.mxu0 0.0
    %158 = vmatmul.mubr.f32.gmra.mrb[0].mxu0 %v91
    %v159 = vpop.f32.mrb[0].mxu0
    %v160 = vadd.f32 %v82, %v159
    %v161 = vpop.f32.mrb[0].mxu0
    %v162 = vadd.f32 %v86, %v161
    %163 = vdwg.mxu0
    %v164 = vmax.f32 %v160, 0.0
    %v165 = vmax.f32 %v162, 0.0
    %v166 = vld [vmem:[#allocation7] sm:$0xff]
    %v167 = vld [vmem:[#allocation7 + $0x8] sm:$0xff]
    %v168 = vld [vmem:[#allocation7 + $0x10] sm:$0xff]
    %v169 = vld [vmem:[#allocation7 + $0x18] sm:$0xff]
    %v170 = vld [vmem:[#allocation7 + $0x20] sm:$0xff]
    %v171 = vld [vmem:[#allocation7 + $0x28] sm:$0xff]
    %v172 = vld [vmem:[#allocation7 + $0x30] sm:$0xff]
    %v173 = vld [vmem:[#allocation7 + $0x38] sm:$0xff]
    %v174 = vld [vmem:[#allocation7 + $0x40] sm:$0xff]
    %v175 = vld [vmem:[#allocation7 + $0x48] sm:$0xff]
    %v176 = vld [vmem:[#allocation7 + $0x50] sm:$0xff]
    %v177 = vld [vmem:[#allocation7 + $0x58] sm:$0xff]
    %v178 = vld [vmem:[#allocation7 + $0x60] sm:$0xff]
    %v179 = vld [vmem:[#allocation7 + $0x68] sm:$0xff]
    %v180 = vld [vmem:[#allocation7 + $0x70] sm:$0xff]
    %v181 = vld [vmem:[#allocation7 + $0x78] sm:$0xff]
    %v182 = vld [vmem:[#allocation7 + $0x80] sm:$0xff]
    %v183 = vld [vmem:[#allocation7 + $0x88] sm:$0xff]
    %v184 = vld [vmem:[#allocation7 + $0x90] sm:$0xff]
    %v185 = vld [vmem:[#allocation7 + $0x98] sm:$0xff]
    %v186 = vld [vmem:[#allocation7 + $0xa0] sm:$0xff]
    %v187 = vld [vmem:[#allocation7 + $0xa8] sm:$0xff]
    %v188 = vld [vmem:[#allocation7 + $0xb0] sm:$0xff]
    %v189 = vld [vmem:[#allocation7 + $0xb8] sm:$0xff]
    %v190 = vld [vmem:[#allocation7 + $0xc0] sm:$0xff]
    %v191 = vld [vmem:[#allocation7 + $0xc8] sm:$0xff]
    %v192 = vld [vmem:[#allocation7 + $0xd0] sm:$0xff]
    %v193 = vld [vmem:[#allocation7 + $0xd8] sm:$0xff]
    %v194 = vld [vmem:[#allocation7 + $0xe0] sm:$0xff]
    %v195 = vld [vmem:[#allocation7 + $0xe8] sm:$0xff]
    %v196 = vld [vmem:[#allocation7 + $0xf0] sm:$0xff]
    %v197 = vld [vmem:[#allocation7 + $0xf8] sm:$0xff]
    %v198 = vld [vmem:[%s4] sm:$0x1]
    %v200 = vlaneseq
    %v201 = vshrl.u32 %v200, 7
    %v202 = vsub.s32 0, %v201
    %v203 = vrot.slane %v198, %v202
    %205 = vmatprep.subr.mxu0 0.0
    %206 = vmatpush1.msra.mxu0 %v166
    %207 = vmatprep.subr.mxu0 0.0
    %208 = vmatpush1.msra.mxu0 %v167
    %209 = vmatprep.subr.mxu0 0.0
    %210 = vmatpush1.msra.mxu0 %v168
    %211 = vmatprep.subr.mxu0 0.0
    %212 = vmatpush1.msra.mxu0 %v169
    %213 = vmatprep.subr.mxu0 0.0
    %214 = vmatpush1.msra.mxu0 %v170
    %215 = vmatprep.subr.mxu0 0.0
    %216 = vmatpush1.msra.mxu0 %v171
    %217 = vmatprep.subr.mxu0 0.0
    %218 = vmatpush1.msra.mxu0 %v172
    %219 = vmatprep.subr.mxu0 0.0
    %220 = vmatpush1.msra.mxu0 %v173
    %221 = vmatprep.subr.mxu0 0.0
    %222 = vmatpush1.msra.mxu0 %v174
    %223 = vmatprep.subr.mxu0 0.0
    %224 = vmatpush1.msra.mxu0 %v175
    %225 = vmatprep.subr.mxu0 0.0
    %226 = vmatpush1.msra.mxu0 %v176
    %227 = vmatprep.subr.mxu0 0.0
    %228 = vmatpush1.msra.mxu0 %v177
    %229 = vmatprep.subr.mxu0 0.0
    %230 = vmatpush1.msra.mxu0 %v178
    %231 = vmatprep.subr.mxu0 0.0
    %232 = vmatpush1.msra.mxu0 %v179
    %233 = vmatprep.subr.mxu0 0.0
    %234 = vmatpush1.msra.mxu0 %v180
    %235 = vmatprep.subr.mxu0 0.0
    %236 = vmatpush1.msra.mxu0 %v181
    %237 = vmatprep.subr.mxu0 0.0
    %238 = vmatpush1.msra.mxu0 %v182
    %239 = vmatprep.subr.mxu0 0.0
    %240 = vmatpush1.msra.mxu0 %v183
    %241 = vmatprep.subr.mxu0 0.0
    %242 = vmatpush1.msra.mxu0 %v184
    %243 = vmatprep.subr.mxu0 0.0
    %244 = vmatpush1.msra.mxu0 %v185
    %245 = vmatprep.subr.mxu0 0.0
    %246 = vmatpush1.msra.mxu0 %v186
    %247 = vmatprep.subr.mxu0 0.0
    %248 = vmatpush1.msra.mxu0 %v187
    %249 = vmatprep.subr.mxu0 0.0
    %250 = vmatpush1.msra.mxu0 %v188
    %251 = vmatprep.subr.mxu0 0.0
    %252 = vmatpush1.msra.mxu0 %v189
    %253 = vmatprep.subr.mxu0 0.0
    %254 = vmatpush1.msra.mxu0 %v190
    %255 = vmatprep.subr.mxu0 0.0
    %256 = vmatpush1.msra.mxu0 %v191
    %257 = vmatprep.subr.mxu0 0.0
    %258 = vmatpush1.msra.mxu0 %v192
    %259 = vmatprep.subr.mxu0 0.0
    %260 = vmatpush1.msra.mxu0 %v193
    %261 = vmatprep.subr.mxu0 0.0
    %262 = vmatpush1.msra.mxu0 %v194
    %263 = vmatprep.subr.mxu0 0.0
    %264 = vmatpush1.msra.mxu0 %v195
    %265 = vmatprep.subr.mxu0 0.0
    %266 = vmatpush1.msra.mxu0 %v196
    %267 = vmatprep.subr.mxu0 0.0
    %268 = vmatpush1.msra.mxu0 %v197
    %269 = vmatprep.mubr.f32.mxu0 %v165
    %270 = vmatmul.mubr.f32.gmra.mrb[0].mxu0 %v164
    %v271 = vpop.f32.mrb[0].mxu0
    %v272 = vadd.f32 %v203, %v271
    %v273 = vpop.f32.mrb[0].mxu0
    %274 = vdwg.mxu0
    %v275 = vlaneseq
    %v276 = vand.u32 %v275, 127
    %vm277 = vcmp.lt.s32.totalorder %v276, 0
    %v278 = vsub.s32 0, %v276
    %v279 = vsel %vm277, %v278, %v276
    %v280 = vmul.u32.u64.compose %v279, 2863311531
    %v281 = vextract.low.u32 %v280
    %v282 = vextract.high.u32 %v280
    %v283 = vshrl.u32 %v282, 2
    %v284 = vmul.u32 %v283, 6
    %v285 = vsub.s32 %v279, %v284
    %v286 = vsub.s32 0, %v285
    %v287 = vsel %vm277, %v286, %v285
    %vm288 = vcmp.ne.s32.totalorder %v287, 0
    %vm289 = vcmp.lt.s32.totalorder %v287, 0
    %vm290 = vmand %vm289, %vm288
    %v291 = vadd.s32 %v287, 6
    %v292 = vsel %vm290, %v291, %v287
    %vm293 = vcmp.lt.s32.totalorder %v276, 24
    %vm294 = vcmp.eq.s32.totalorder %v292, 0
    %vm295 = vcmp.eq.s32.totalorder %v292, 4
    %vm296 = vmor %vm294, %vm295
    %vm297 = vmand %vm293, %vm296
    %v298 = vsel %vm297, 1.0, %v272
    %vm299 = vcmp.eq.s32.totalorder %v292, 1
    %vm300 = vcmp.eq.s32.totalorder %v292, 3
    %vm301 = vmor %vm299, %vm300
    %vm302 = vmand %vm293, %vm301
    %v303 = vsel %vm302, 0.0, %v298
    %304 = vst [vmem:[#allocation8] sm:$0xff] %v303
    // Predicated region
    $region34: #{tpu_custom_call.1} parent=1 // pred_check
      _
    $region35: #{tpu_custom_call.1} parent=1 // pred_check_branch
      %306 = sbr.rel (0) target = $region37
    $region36: #{tpu_custom_call.1} parent=1 // pred_region
      %s308 = ssub.s32 128, 128
      %309 = vsyncadd [#allocation4], %s308
      %s311 = sshll.u32 [#allocation8], 4
      %s312 = int_to_ptr.vmem [resolvable:$true] %s311
      %314 = dma.vmem_to_hbm [thread:$0]  %s312, 128, %s5, [#allocation4]
    $region37: #{tpu_custom_call.1} parent=1 // pred_fallthru
      _
    // Predicated region
    $region38: #{tpu_custom_call.1} parent=1 // pred_check
      _
    $region39: #{tpu_custom_call.1} parent=1 // pred_check_branch
      %316 = sbr.rel (0) target = $region41
    $region40: #{tpu_custom_call.1} parent=1 // pred_region
      %317 = dma.done [#allocation4], 128
    $region41: #{tpu_custom_call.1} parent=1 // pred_fallthru
      _
    %318 = vsyncpa [#allocation3], 1
    %319 = vsyncpa [#allocation6], 1
    %320 = vsyncpa [#allocation4], 1

</llo_original>
